<compile_context>
chip_gen: v6e
topology: v6e:2x2x1
jax: 0.10.0
libtpu: 0.0.40
codegen_flags: <defaults>
</compile_context>

<pallas_src>
import functools
import math

import jax
import jax.numpy as jnp
from jax.experimental import pallas as pl
from jax.experimental.pallas import tpu as pltpu


def _round_up(x, m):
    return ((x + m - 1) // m) * m


def _cdiv(a, b):
    return (a + b - 1) // b


def mlp_kernel(x_ref,
               w1_ref, b1_ref,
               w2_ref, b2_ref,
               w3_ref, b3_ref,
               w4_ref, b4_ref,
               w5_ref, b5_ref,
               o_ref, *, lane_group):
    """One batch tile of the fused 5-layer MLP + softmax(dim=1).

    x tile arrives f32 and is cast to bf16 in-kernel; matmul operands are bf16
    (MXU-native), accumulation is f32, and all elementwise math (bias, ReLU,
    softmax) stays in f32. If lane_group > 1 the output is written as a
    lane-dense (tb/lane_group, lane_group*out_dim) slab.
    """
    h = x_ref[...].astype(jnp.bfloat16)  # in-kernel f32 -> bf16 cast (VPU, hidden)

    # Layer 1: Linear -> (Dropout = id) -> ReLU
    h = jnp.dot(h, w1_ref[...], preferred_element_type=jnp.float32) + b1_ref[...]
    h = jnp.maximum(h, 0.0)

    # Layer 2
    h = jnp.dot(h.astype(jnp.bfloat16), w2_ref[...],
                preferred_element_type=jnp.float32) + b2_ref[...]
    h = jnp.maximum(h, 0.0)

    # Layer 3
    h = jnp.dot(h.astype(jnp.bfloat16), w3_ref[...],
                preferred_element_type=jnp.float32) + b3_ref[...]
    h = jnp.maximum(h, 0.0)

    # Layer 4
    h = jnp.dot(h.astype(jnp.bfloat16), w4_ref[...],
                preferred_element_type=jnp.float32) + b4_ref[...]
    h = jnp.maximum(h, 0.0)

    # Output layer + Softmax over dim=1 (feature axis), all in f32.
    logits = jnp.dot(h.astype(jnp.bfloat16), w5_ref[...],
                     preferred_element_type=jnp.float32) + b5_ref[...]
    m = jnp.max(logits, axis=1, keepdims=True)
    e = jnp.exp(logits - m)
    denom = jnp.sum(e, axis=1, keepdims=True)
    inv = pl.reciprocal(denom, approx=True)       # EUP vrcp slot (otherwise idle)
    inv = inv * (2.0 - denom * inv)               # one Newton step -> ~exact
    probs = e * inv

    if lane_group > 1:
        tb, od = probs.shape
        # Row-major regrouping of `lane_group` rows x od cols -> 128 lanes:
        # XLU work on an otherwise idle slot; turns masked vst.msk into full vst.
        probs = probs.reshape(tb // lane_group, lane_group * od)
    o_ref[...] = probs.astype(o_ref.dtype)


def make_mlp_params(key, input_dim, hidden_units, output_dim):
    """PyTorch-style uniform init. Weights returned (in, out) in bf16 (MXU-native);
    biases (1, out) in f32 (elementwise path stays f32)."""
    dims = [input_dim] + list(hidden_units) + [output_dim]
    params = []
    for i in range(5):
        fan_in, fan_out = dims[i], dims[i + 1]
        key, kw, kb = jax.random.split(key, 3)
        bound = 1.0 / math.sqrt(fan_in)
        w = jax.random.uniform(kw, (fan_in, fan_out), jnp.float32, -bound, bound)
        b = jax.random.uniform(kb, (1, fan_out), jnp.float32, -bound, bound)
        params.append((w.astype(jnp.bfloat16), b))
    return params


def _choose_tiling(batch, desired_tb, lane_group):
    """Pick (tile_batch, padded_batch).

    - tiles are multiples of max(128, 8*lane_group) so both the bf16 sublane
      packing and the (8,128) block constraint (incl. the lane-dense out block)
      are satisfied, unless the whole batch fits in a single tile.
    - guarantee >= 2 grid steps (feed both v7x TensorCores) when the batch is
      big enough; more steps if the batch exceeds the desired tile.
    - balance tiles (cdiv(batch, steps)) so padding waste stays bounded.
    """
    padded16 = _round_up(batch, 16)
    align = max(128, 8 * lane_group)
    min_steps = 2
    if padded16 < min_steps * align:
        return padded16, padded16          # single tile, block == full array dims
    steps = max(min_steps, _cdiv(padded16, max(desired_tb, align)))
    tb = _round_up(_cdiv(padded16, steps), align)
    padded = tb * _cdiv(padded16, tb)
    return tb, padded


def mlp_forward(x, params, *, tile_batch=8192):
    """x: (batch, input_dim) f32. Returns (batch, output_dim) f32 softmax probs.

    tile_batch default (8192) is safe on v5e's 16 MiB scoped-VMEM default and
    trivially fits v6e/v7x; the call also raises the scoped limit to 32 MiB so
    user-chosen larger tiles keep headroom. On v7x, re-derive against 64 MiB
    physical before pushing past ~16K.
    """
    batch, input_dim = x.shape
    output_dim = params[-1][0].shape[1]

    # Lane-dense output packing factor: group rows so the stored slab is 128 wide.
    lane_group = 128 // output_dim if (128 % output_dim == 0) else 1
    tb, padded = _choose_tiling(batch, tile_batch, lane_group)
    if lane_group > 1 and tb % lane_group != 0:
        lane_group = 1
        tb, padded = _choose_tiling(batch, tile_batch, 1)

    if padded != batch:
        x = jnp.pad(x, ((0, padded - batch), (0, 0)))
    # NOTE: x stays f32 in HBM; the f32->bf16 cast happens inside the kernel.

    grid = (padded // tb,)

    # x / out tiled along batch; weights & biases use constant block index so
    # they are DMA'd once and stay VMEM-resident across all grid steps.
    flat_inputs = [x]
    in_specs = [pl.BlockSpec((tb, input_dim), lambda i: (i, 0))]
    for w, b in params:
        flat_inputs.extend([w, b])
        in_specs.append(pl.BlockSpec(w.shape, lambda i: (0, 0)))
        in_specs.append(pl.BlockSpec(b.shape, lambda i: (0, 0)))

    # Advisory cost estimate for XLA's scheduler.
    flops = 2 * padded * sum(int(w.shape[0]) * int(w.shape[1]) for w, _ in params)
    bytes_accessed = int(
        x.size * x.dtype.itemsize
        + sum(w.size * w.dtype.itemsize + b.size * b.dtype.itemsize for w, b in params)
        + padded * output_dim * 4)
    cost = pl.CostEstimate(flops=flops,
                           transcendentals=padded * output_dim,
                           bytes_accessed=bytes_accessed)

    def build_call(lg):
        out_rows = padded // lg
        out_cols = lg * output_dim
        return pl.pallas_call(
            functools.partial(mlp_kernel, lane_group=lg),
            out_shape=jax.ShapeDtypeStruct((out_rows, out_cols), jnp.float32),
            grid=grid,
            in_specs=in_specs,
            out_specs=pl.BlockSpec((tb // lg, out_cols), lambda i: (i, 0)),
            compiler_params=pltpu.CompilerParams(
                dimension_semantics=("parallel",),     # v7x: shard tiles over 2 TCs
                vmem_limit_bytes=32 * 1024 * 1024),    # explicit, safe on v5e/v6e/v7x
            cost_estimate=cost,
        )

    try:
        out = build_call(lane_group)(*flat_inputs)
    except Exception:
        if lane_group == 1:
            raise
        # Fallback: narrow (tb, output_dim) store if the lane-dense in-kernel
        # reshape is rejected by this Mosaic version.
        lane_group = 1
        out = build_call(1)(*flat_inputs)

    out = out.reshape(padded, output_dim)   # undo lane-dense packing (no-op if lg==1)
    return out[:batch]


def mlp_reference(x, params):
    """Pure-JAX reference with the same bf16-operand / f32-accumulate recipe."""
    h = x.astype(jnp.bfloat16)
    for (w, b) in params[:-1]:
        h32 = jnp.dot(h, w, preferred_element_type=jnp.float32) + b
        h32 = jnp.maximum(h32, 0.0)
        h = h32.astype(jnp.bfloat16)
    w, b = params[-1]
    logits = jnp.dot(h, w, preferred_element_type=jnp.float32) + b
    return jax.nn.softmax(logits, axis=1)


if __name__ == "__main__":
    # Shapes consistent with the module:
    #   MLP(input_dim=32, output_dim=8, hidden_units=(64, 64, 32, 32), dropout_rates=...)
    input_dim = 32
    hidden_units = (64, 64, 32, 32)
    output_dim = 8

    key = jax.random.PRNGKey(0)
    key, kp = jax.random.split(key)
    params = make_mlp_params(kp, input_dim, hidden_units, output_dim)

    # Case 1: tiny batch -> single tile (block == full array dims).
    # Case 2: mid batch  -> multi-step grid (>=2 tiles, lane-dense blocks, padding).
    for batch in (20, 300):
        key, kx = jax.random.split(key)
        x = jax.random.normal(kx, (batch, input_dim), jnp.float32)

        out = mlp_forward(x, params)
        out = jax.block_until_ready(out)

        ref = mlp_reference(x, params)
        assert out.shape == (batch, output_dim)
        assert jnp.allclose(out, ref, atol=1e-4, rtol=1e-4), \
            f"Pallas output mismatch vs reference (batch={batch})"
        # Softmax rows sum to 1
        assert jnp.allclose(jnp.sum(out, axis=1), jnp.ones((batch,)), atol=1e-4)

    print("KERNEL_OK")
</pallas_src>

<mosaic_0001>
module attributes {stable_mosaic.version = 11 : i64} {
  func.func @mlp_kernel(%arg0: i32, %arg1: memref<32x32xf32, #tpu.memory_space<vmem>>, %arg2: memref<32x64xbf16, #tpu.memory_space<vmem>>, %arg3: memref<1x64xf32, #tpu.memory_space<vmem>>, %arg4: memref<64x64xbf16, #tpu.memory_space<vmem>>, %arg5: memref<1x64xf32, #tpu.memory_space<vmem>>, %arg6: memref<64x32xbf16, #tpu.memory_space<vmem>>, %arg7: memref<1x32xf32, #tpu.memory_space<vmem>>, %arg8: memref<32x32xbf16, #tpu.memory_space<vmem>>, %arg9: memref<1x32xf32, #tpu.memory_space<vmem>>, %arg10: memref<32x8xbf16, #tpu.memory_space<vmem>>, %arg11: memref<1x8xf32, #tpu.memory_space<vmem>>, %arg12: memref<2x128xf32, #tpu.memory_space<vmem>>) attributes {dimension_semantics = [#tpu.dimension_semantics<parallel>], iteration_bounds = array<i64: 1>, scalar_prefetch = 0 : i64, scratch_operands = 0 : i64, tpu.core_type = #tpu.core_type<tc>, window_params = [{transform_indices = @transform_0, window_bounds = array<i64: 32, 32>}, {pipeline_mode = #tpu.pipeline_mode<synchronous>, transform_indices = @transform_1, window_bounds = array<i64: 32, 64>}, {pipeline_mode = #tpu.pipeline_mode<synchronous>, transform_indices = @transform_2, window_bounds = array<i64: 1, 64>}, {pipeline_mode = #tpu.pipeline_mode<synchronous>, transform_indices = @transform_3, window_bounds = array<i64: 64, 64>}, {pipeline_mode = #tpu.pipeline_mode<synchronous>, transform_indices = @transform_4, window_bounds = array<i64: 1, 64>}, {pipeline_mode = #tpu.pipeline_mode<synchronous>, transform_indices = @transform_5, window_bounds = array<i64: 64, 32>}, {pipeline_mode = #tpu.pipeline_mode<synchronous>, transform_indices = @transform_6, window_bounds = array<i64: 1, 32>}, {pipeline_mode = #tpu.pipeline_mode<synchronous>, transform_indices = @transform_7, window_bounds = array<i64: 32, 32>}, {pipeline_mode = #tpu.pipeline_mode<synchronous>, transform_indices = @transform_8, window_bounds = array<i64: 1, 32>}, {pipeline_mode = #tpu.pipeline_mode<synchronous>, transform_indices = @transform_9, window_bounds = array<i64: 32, 8>}, {pipeline_mode = #tpu.pipeline_mode<synchronous>, transform_indices = @transform_10, window_bounds = array<i64: 1, 8>}, {transform_indices = @transform_11, window_bounds = array<i64: 2, 128>}]} {
    %c0 = arith.constant 0 : index
    %c0_0 = arith.constant 0 : index
    %0 = vector.load %arg1[%c0, %c0_0] : memref<32x32xf32, #tpu.memory_space<vmem>>, vector<32x32xf32>
    %1 = arith.truncf %0 : vector<32x32xf32> to vector<32x32xbf16>
    %c0_1 = arith.constant 0 : index
    %c0_2 = arith.constant 0 : index
    %2 = vector.load %arg2[%c0_1, %c0_2] : memref<32x64xbf16, #tpu.memory_space<vmem>>, vector<32x64xbf16>
    %cst = arith.constant dense<0.000000e+00> : vector<32x64xf32>
    %3 = tpu.matmul %1, %2, %cst {dimension_numbers = #tpu.dot_dimension_numbers<[1], [0], [0], [1], [0, 0, 1, 1], [], []>} : vector<32x32xbf16>, vector<32x64xbf16>, vector<32x64xf32> -> vector<32x64xf32>
    %c0_3 = arith.constant 0 : index
    %c0_4 = arith.constant 0 : index
    %4 = vector.load %arg3[%c0_3, %c0_4] : memref<1x64xf32, #tpu.memory_space<vmem>>, vector<1x64xf32>
    %5 = vector.broadcast %4 : vector<1x64xf32> to vector<32x64xf32>
    %6 = arith.addf %3, %5 : vector<32x64xf32>
    %cst_5 = arith.constant 0.000000e+00 : f32
    %7 = vector.broadcast %cst_5 : f32 to vector<32x64xf32>
    %8 = arith.maximumf %6, %7 : vector<32x64xf32>
    %9 = arith.truncf %8 : vector<32x64xf32> to vector<32x64xbf16>
    %c0_6 = arith.constant 0 : index
    %c0_7 = arith.constant 0 : index
    %10 = vector.load %arg4[%c0_6, %c0_7] : memref<64x64xbf16, #tpu.memory_space<vmem>>, vector<64x64xbf16>
    %cst_8 = arith.constant dense<0.000000e+00> : vector<32x64xf32>
    %11 = tpu.matmul %9, %10, %cst_8 {dimension_numbers = #tpu.dot_dimension_numbers<[1], [0], [0], [1], [0, 0, 1, 1], [], []>} : vector<32x64xbf16>, vector<64x64xbf16>, vector<32x64xf32> -> vector<32x64xf32>
    %c0_9 = arith.constant 0 : index
    %c0_10 = arith.constant 0 : index
    %12 = vector.load %arg5[%c0_9, %c0_10] : memref<1x64xf32, #tpu.memory_space<vmem>>, vector<1x64xf32>
    %13 = vector.broadcast %12 : vector<1x64xf32> to vector<32x64xf32>
    %14 = arith.addf %11, %13 : vector<32x64xf32>
    %cst_11 = arith.constant 0.000000e+00 : f32
    %15 = vector.broadcast %cst_11 : f32 to vector<32x64xf32>
    %16 = arith.maximumf %14, %15 : vector<32x64xf32>
    %17 = arith.truncf %16 : vector<32x64xf32> to vector<32x64xbf16>
    %c0_12 = arith.constant 0 : index
    %c0_13 = arith.constant 0 : index
    %18 = vector.load %arg6[%c0_12, %c0_13] : memref<64x32xbf16, #tpu.memory_space<vmem>>, vector<64x32xbf16>
    %cst_14 = arith.constant dense<0.000000e+00> : vector<32x32xf32>
    %19 = tpu.matmul %17, %18, %cst_14 {dimension_numbers = #tpu.dot_dimension_numbers<[1], [0], [0], [1], [0, 0, 1, 1], [], []>} : vector<32x64xbf16>, vector<64x32xbf16>, vector<32x32xf32> -> vector<32x32xf32>
    %c0_15 = arith.constant 0 : index
    %c0_16 = arith.constant 0 : index
    %20 = vector.load %arg7[%c0_15, %c0_16] : memref<1x32xf32, #tpu.memory_space<vmem>>, vector<1x32xf32>
    %21 = vector.broadcast %20 : vector<1x32xf32> to vector<32x32xf32>
    %22 = arith.addf %19, %21 : vector<32x32xf32>
    %cst_17 = arith.constant 0.000000e+00 : f32
    %23 = vector.broadcast %cst_17 : f32 to vector<32x32xf32>
    %24 = arith.maximumf %22, %23 : vector<32x32xf32>
    %25 = arith.truncf %24 : vector<32x32xf32> to vector<32x32xbf16>
    %c0_18 = arith.constant 0 : index
    %c0_19 = arith.constant 0 : index
    %26 = vector.load %arg8[%c0_18, %c0_19] : memref<32x32xbf16, #tpu.memory_space<vmem>>, vector<32x32xbf16>
    %cst_20 = arith.constant dense<0.000000e+00> : vector<32x32xf32>
    %27 = tpu.matmul %25, %26, %cst_20 {dimension_numbers = #tpu.dot_dimension_numbers<[1], [0], [0], [1], [0, 0, 1, 1], [], []>} : vector<32x32xbf16>, vector<32x32xbf16>, vector<32x32xf32> -> vector<32x32xf32>
    %c0_21 = arith.constant 0 : index
    %c0_22 = arith.constant 0 : index
    %28 = vector.load %arg9[%c0_21, %c0_22] : memref<1x32xf32, #tpu.memory_space<vmem>>, vector<1x32xf32>
    %29 = vector.broadcast %28 : vector<1x32xf32> to vector<32x32xf32>
    %30 = arith.addf %27, %29 : vector<32x32xf32>
    %cst_23 = arith.constant 0.000000e+00 : f32
    %31 = vector.broadcast %cst_23 : f32 to vector<32x32xf32>
    %32 = arith.maximumf %30, %31 : vector<32x32xf32>
    %33 = arith.truncf %32 : vector<32x32xf32> to vector<32x32xbf16>
    %c0_24 = arith.constant 0 : index
    %c0_25 = arith.constant 0 : index
    %34 = vector.load %arg10[%c0_24, %c0_25] : memref<32x8xbf16, #tpu.memory_space<vmem>>, vector<32x8xbf16>
    %cst_26 = arith.constant dense<0.000000e+00> : vector<32x8xf32>
    %35 = tpu.matmul %33, %34, %cst_26 {dimension_numbers = #tpu.dot_dimension_numbers<[1], [0], [0], [1], [0, 0, 1, 1], [], []>} : vector<32x32xbf16>, vector<32x8xbf16>, vector<32x8xf32> -> vector<32x8xf32>
    %c0_27 = arith.constant 0 : index
    %c0_28 = arith.constant 0 : index
    %36 = vector.load %arg11[%c0_27, %c0_28] : memref<1x8xf32, #tpu.memory_space<vmem>>, vector<1x8xf32>
    %37 = vector.broadcast %36 : vector<1x8xf32> to vector<32x8xf32>
    %38 = arith.addf %35, %37 : vector<32x8xf32>
    %cst_29 = arith.constant dense<0xFF800000> : vector<32xf32>
    %39 = vector.multi_reduction <maximumf>, %38, %cst_29 [1] : vector<32x8xf32> to vector<32xf32>
    %40 = vector.shape_cast %39 : vector<32xf32> to vector<32x1xf32>
    %41 = vector.broadcast %40 : vector<32x1xf32> to vector<32x8xf32>
    %42 = arith.subf %38, %41 : vector<32x8xf32>
    %43 = math.exp %42 : vector<32x8xf32>
    %cst_30 = arith.constant dense<0.000000e+00> : vector<32xf32>
    %44 = vector.multi_reduction <add>, %43, %cst_30 [1] : vector<32x8xf32> to vector<32xf32>
    %45 = vector.shape_cast %44 : vector<32xf32> to vector<32x1xf32>
    %46 = tpu.reciprocal %45 {approx = true} : vector<32x1xf32> -> vector<32x1xf32>
    %47 = arith.mulf %45, %46 : vector<32x1xf32>
    %cst_31 = arith.constant 2.000000e+00 : f32
    %48 = vector.broadcast %cst_31 : f32 to vector<32x1xf32>
    %49 = arith.subf %48, %47 : vector<32x1xf32>
    %50 = arith.mulf %46, %49 : vector<32x1xf32>
    %51 = vector.broadcast %50 : vector<32x1xf32> to vector<32x8xf32>
    %52 = arith.mulf %43, %51 : vector<32x8xf32>
    %53 = vector.shape_cast %52 : vector<32x8xf32> to vector<2x128xf32>
    %c0_32 = arith.constant 0 : index
    %c0_33 = arith.constant 0 : index
    %54 = vector.load %arg12[%c0_32, %c0_33] : memref<2x128xf32, #tpu.memory_space<vmem>>, vector<2x128xf32>
    tpu.vector_store %arg12[%c0_32, %c0_33], %53 {strides = array<i32>} : memref<2x128xf32, #tpu.memory_space<vmem>>, vector<2x128xf32>,
    return
  }
  func.func @transform_0(%arg0: i32) -> (i32, i32) {
    %c0_i32 = arith.constant 0 : i32
    %c0_i32_0 = arith.constant 0 : i32
    return %arg0, %c0_i32 : i32, i32
  }
  func.func @transform_1(%arg0: i32) -> (i32, i32) {
    %c0_i32 = arith.constant 0 : i32
    %c0_i32_0 = arith.constant 0 : i32
    %c0_i32_1 = arith.constant 0 : i32
    return %c0_i32, %c0_i32_0 : i32, i32
  }
  func.func @transform_2(%arg0: i32) -> (i32, i32) {
    %c0_i32 = arith.constant 0 : i32
    %c0_i32_0 = arith.constant 0 : i32
    %c0_i32_1 = arith.constant 0 : i32
    return %c0_i32, %c0_i32_0 : i32, i32
  }
  func.func @transform_3(%arg0: i32) -> (i32, i32) {
    %c0_i32 = arith.constant 0 : i32
    %c0_i32_0 = arith.constant 0 : i32
    %c0_i32_1 = arith.constant 0 : i32
    return %c0_i32, %c0_i32_0 : i32, i32
  }
  func.func @transform_4(%arg0: i32) -> (i32, i32) {
    %c0_i32 = arith.constant 0 : i32
    %c0_i32_0 = arith.constant 0 : i32
    %c0_i32_1 = arith.constant 0 : i32
    return %c0_i32, %c0_i32_0 : i32, i32
  }
  func.func @transform_5(%arg0: i32) -> (i32, i32) {
    %c0_i32 = arith.constant 0 : i32
    %c0_i32_0 = arith.constant 0 : i32
    %c0_i32_1 = arith.constant 0 : i32
    return %c0_i32, %c0_i32_0 : i32, i32
  }
  func.func @transform_6(%arg0: i32) -> (i32, i32) {
    %c0_i32 = arith.constant 0 : i32
    %c0_i32_0 = arith.constant 0 : i32
    %c0_i32_1 = arith.constant 0 : i32
    return %c0_i32, %c0_i32_0 : i32, i32
  }
  func.func @transform_7(%arg0: i32) -> (i32, i32) {
    %c0_i32 = arith.constant 0 : i32
    %c0_i32_0 = arith.constant 0 : i32
    %c0_i32_1 = arith.constant 0 : i32
    return %c0_i32, %c0_i32_0 : i32, i32
  }
  func.func @transform_8(%arg0: i32) -> (i32, i32) {
    %c0_i32 = arith.constant 0 : i32
    %c0_i32_0 = arith.constant 0 : i32
    %c0_i32_1 = arith.constant 0 : i32
    return %c0_i32, %c0_i32_0 : i32, i32
  }
  func.func @transform_9(%arg0: i32) -> (i32, i32) {
    %c0_i32 = arith.constant 0 : i32
    %c0_i32_0 = arith.constant 0 : i32
    %c0_i32_1 = arith.constant 0 : i32
    return %c0_i32, %c0_i32_0 : i32, i32
  }
  func.func @transform_10(%arg0: i32) -> (i32, i32) {
    %c0_i32 = arith.constant 0 : i32
    %c0_i32_0 = arith.constant 0 : i32
    %c0_i32_1 = arith.constant 0 : i32
    return %c0_i32, %c0_i32_0 : i32, i32
  }
  func.func @transform_11(%arg0: i32) -> (i32, i32) {
    %c0_i32 = arith.constant 0 : i32
    %c0_i32_0 = arith.constant 0 : i32
    return %arg0, %c0_i32 : i32, i32
  }
}

module attributes {stable_mosaic.version = 11 : i64} {
  func.func @mlp_kernel(%arg0: i32, %arg1: memref<32x32xf32, #tpu.memory_space<vmem>>, %arg2: memref<32x64xbf16, #tpu.memory_space<vmem>>, %arg3: memref<1x64xf32, #tpu.memory_space<vmem>>, %arg4: memref<64x64xbf16, #tpu.memory_space<vmem>>, %arg5: memref<1x64xf32, #tpu.memory_space<vmem>>, %arg6: memref<64x32xbf16, #tpu.memory_space<vmem>>, %arg7: memref<1x32xf32, #tpu.memory_space<vmem>>, %arg8: memref<32x32xbf16, #tpu.memory_space<vmem>>, %arg9: memref<1x32xf32, #tpu.memory_space<vmem>>, %arg10: memref<32x8xbf16, #tpu.memory_space<vmem>>, %arg11: memref<1x8xf32, #tpu.memory_space<vmem>>, %arg12: memref<32x8xf32, #tpu.memory_space<vmem>>) attributes {dimension_semantics = [#tpu.dimension_semantics<parallel>], iteration_bounds = array<i64: 1>, scalar_prefetch = 0 : i64, scratch_operands = 0 : i64, tpu.core_type = #tpu.core_type<tc>, window_params = [{transform_indices = @transform_0, window_bounds = array<i64: 32, 32>}, {pipeline_mode = #tpu.pipeline_mode<synchronous>, transform_indices = @transform_1, window_bounds = array<i64: 32, 64>}, {pipeline_mode = #tpu.pipeline_mode<synchronous>, transform_indices = @transform_2, window_bounds = array<i64: 1, 64>}, {pipeline_mode = #tpu.pipeline_mode<synchronous>, transform_indices = @transform_3, window_bounds = array<i64: 64, 64>}, {pipeline_mode = #tpu.pipeline_mode<synchronous>, transform_indices = @transform_4, window_bounds = array<i64: 1, 64>}, {pipeline_mode = #tpu.pipeline_mode<synchronous>, transform_indices = @transform_5, window_bounds = array<i64: 64, 32>}, {pipeline_mode = #tpu.pipeline_mode<synchronous>, transform_indices = @transform_6, window_bounds = array<i64: 1, 32>}, {pipeline_mode = #tpu.pipeline_mode<synchronous>, transform_indices = @transform_7, window_bounds = array<i64: 32, 32>}, {pipeline_mode = #tpu.pipeline_mode<synchronous>, transform_indices = @transform_8, window_bounds = array<i64: 1, 32>}, {pipeline_mode = #tpu.pipeline_mode<synchronous>, transform_indices = @transform_9, window_bounds = array<i64: 32, 8>}, {pipeline_mode = #tpu.pipeline_mode<synchronous>, transform_indices = @transform_10, window_bounds = array<i64: 1, 8>}, {transform_indices = @transform_11, window_bounds = array<i64: 32, 8>}]} {
    %c0 = arith.constant 0 : index
    %c0_0 = arith.constant 0 : index
    %0 = vector.load %arg1[%c0, %c0_0] : memref<32x32xf32, #tpu.memory_space<vmem>>, vector<32x32xf32>
    %1 = arith.truncf %0 : vector<32x32xf32> to vector<32x32xbf16>
    %c0_1 = arith.constant 0 : index
    %c0_2 = arith.constant 0 : index
    %2 = vector.load %arg2[%c0_1, %c0_2] : memref<32x64xbf16, #tpu.memory_space<vmem>>, vector<32x64xbf16>
    %cst = arith.constant dense<0.000000e+00> : vector<32x64xf32>
    %3 = tpu.matmul %1, %2, %cst {dimension_numbers = #tpu.dot_dimension_numbers<[1], [0], [0], [1], [0, 0, 1, 1], [], []>} : vector<32x32xbf16>, vector<32x64xbf16>, vector<32x64xf32> -> vector<32x64xf32>
    %c0_3 = arith.constant 0 : index
    %c0_4 = arith.constant 0 : index
    %4 = vector.load %arg3[%c0_3, %c0_4] : memref<1x64xf32, #tpu.memory_space<vmem>>, vector<1x64xf32>
    %5 = vector.broadcast %4 : vector<1x64xf32> to vector<32x64xf32>
    %6 = arith.addf %3, %5 : vector<32x64xf32>
    %cst_5 = arith.constant 0.000000e+00 : f32
    %7 = vector.broadcast %cst_5 : f32 to vector<32x64xf32>
    %8 = arith.maximumf %6, %7 : vector<32x64xf32>
    %9 = arith.truncf %8 : vector<32x64xf32> to vector<32x64xbf16>
    %c0_6 = arith.constant 0 : index
    %c0_7 = arith.constant 0 : index
    %10 = vector.load %arg4[%c0_6, %c0_7] : memref<64x64xbf16, #tpu.memory_space<vmem>>, vector<64x64xbf16>
    %cst_8 = arith.constant dense<0.000000e+00> : vector<32x64xf32>
    %11 = tpu.matmul %9, %10, %cst_8 {dimension_numbers = #tpu.dot_dimension_numbers<[1], [0], [0], [1], [0, 0, 1, 1], [], []>} : vector<32x64xbf16>, vector<64x64xbf16>, vector<32x64xf32> -> vector<32x64xf32>
    %c0_9 = arith.constant 0 : index
    %c0_10 = arith.constant 0 : index
    %12 = vector.load %arg5[%c0_9, %c0_10] : memref<1x64xf32, #tpu.memory_space<vmem>>, vector<1x64xf32>
    %13 = vector.broadcast %12 : vector<1x64xf32> to vector<32x64xf32>
    %14 = arith.addf %11, %13 : vector<32x64xf32>
    %cst_11 = arith.constant 0.000000e+00 : f32
    %15 = vector.broadcast %cst_11 : f32 to vector<32x64xf32>
    %16 = arith.maximumf %14, %15 : vector<32x64xf32>
    %17 = arith.truncf %16 : vector<32x64xf32> to vector<32x64xbf16>
    %c0_12 = arith.constant 0 : index
    %c0_13 = arith.constant 0 : index
    %18 = vector.load %arg6[%c0_12, %c0_13] : memref<64x32xbf16, #tpu.memory_space<vmem>>, vector<64x32xbf16>
    %cst_14 = arith.constant dense<0.000000e+00> : vector<32x32xf32>
    %19 = tpu.matmul %17, %18, %cst_14 {dimension_numbers = #tpu.dot_dimension_numbers<[1], [0], [0], [1], [0, 0, 1, 1], [], []>} : vector<32x64xbf16>, vector<64x32xbf16>, vector<32x32xf32> -> vector<32x32xf32>
    %c0_15 = arith.constant 0 : index
    %c0_16 = arith.constant 0 : index
    %20 = vector.load %arg7[%c0_15, %c0_16] : memref<1x32xf32, #tpu.memory_space<vmem>>, vector<1x32xf32>
    %21 = vector.broadcast %20 : vector<1x32xf32> to vector<32x32xf32>
    %22 = arith.addf %19, %21 : vector<32x32xf32>
    %cst_17 = arith.constant 0.000000e+00 : f32
    %23 = vector.broadcast %cst_17 : f32 to vector<32x32xf32>
    %24 = arith.maximumf %22, %23 : vector<32x32xf32>
    %25 = arith.truncf %24 : vector<32x32xf32> to vector<32x32xbf16>
    %c0_18 = arith.constant 0 : index
    %c0_19 = arith.constant 0 : index
    %26 = vector.load %arg8[%c0_18, %c0_19] : memref<32x32xbf16, #tpu.memory_space<vmem>>, vector<32x32xbf16>
    %cst_20 = arith.constant dense<0.000000e+00> : vector<32x32xf32>
    %27 = tpu.matmul %25, %26, %cst_20 {dimension_numbers = #tpu.dot_dimension_numbers<[1], [0], [0], [1], [0, 0, 1, 1], [], []>} : vector<32x32xbf16>, vector<32x32xbf16>, vector<32x32xf32> -> vector<32x32xf32>
    %c0_21 = arith.constant 0 : index
    %c0_22 = arith.constant 0 : index
    %28 = vector.load %arg9[%c0_21, %c0_22] : memref<1x32xf32, #tpu.memory_space<vmem>>, vector<1x32xf32>
    %29 = vector.broadcast %28 : vector<1x32xf32> to vector<32x32xf32>
    %30 = arith.addf %27, %29 : vector<32x32xf32>
    %cst_23 = arith.constant 0.000000e+00 : f32
    %31 = vector.broadcast %cst_23 : f32 to vector<32x32xf32>
    %32 = arith.maximumf %30, %31 : vector<32x32xf32>
    %33 = arith.truncf %32 : vector<32x32xf32> to vector<32x32xbf16>
    %c0_24 = arith.constant 0 : index
    %c0_25 = arith.constant 0 : index
    %34 = vector.load %arg10[%c0_24, %c0_25] : memref<32x8xbf16, #tpu.memory_space<vmem>>, vector<32x8xbf16>
    %cst_26 = arith.constant dense<0.000000e+00> : vector<32x8xf32>
    %35 = tpu.matmul %33, %34, %cst_26 {dimension_numbers = #tpu.dot_dimension_numbers<[1], [0], [0], [1], [0, 0, 1, 1], [], []>} : vector<32x32xbf16>, vector<32x8xbf16>, vector<32x8xf32> -> vector<32x8xf32>
    %c0_27 = arith.constant 0 : index
    %c0_28 = arith.constant 0 : index
    %36 = vector.load %arg11[%c0_27, %c0_28] : memref<1x8xf32, #tpu.memory_space<vmem>>, vector<1x8xf32>
    %37 = vector.broadcast %36 : vector<1x8xf32> to vector<32x8xf32>
    %38 = arith.addf %35, %37 : vector<32x8xf32>
    %cst_29 = arith.constant dense<0xFF800000> : vector<32xf32>
    %39 = vector.multi_reduction <maximumf>, %38, %cst_29 [1] : vector<32x8xf32> to vector<32xf32>
    %40 = vector.shape_cast %39 : vector<32xf32> to vector<32x1xf32>
    %41 = vector.broadcast %40 : vector<32x1xf32> to vector<32x8xf32>
    %42 = arith.subf %38, %41 : vector<32x8xf32>
    %43 = math.exp %42 : vector<32x8xf32>
    %cst_30 = arith.constant dense<0.000000e+00> : vector<32xf32>
    %44 = vector.multi_reduction <add>, %43, %cst_30 [1] : vector<32x8xf32> to vector<32xf32>
    %45 = vector.shape_cast %44 : vector<32xf32> to vector<32x1xf32>
    %46 = tpu.reciprocal %45 {approx = true} : vector<32x1xf32> -> vector<32x1xf32>
    %47 = arith.mulf %45, %46 : vector<32x1xf32>
    %cst_31 = arith.constant 2.000000e+00 : f32
    %48 = vector.broadcast %cst_31 : f32 to vector<32x1xf32>
    %49 = arith.subf %48, %47 : vector<32x1xf32>
    %50 = arith.mulf %46, %49 : vector<32x1xf32>
    %51 = vector.broadcast %50 : vector<32x1xf32> to vector<32x8xf32>
    %52 = arith.mulf %43, %51 : vector<32x8xf32>
    %c0_32 = arith.constant 0 : index
    %c0_33 = arith.constant 0 : index
    %53 = vector.load %arg12[%c0_32, %c0_33] : memref<32x8xf32, #tpu.memory_space<vmem>>, vector<32x8xf32>
    tpu.vector_store %arg12[%c0_32, %c0_33], %52 {strides = array<i32>} : memref<32x8xf32, #tpu.memory_space<vmem>>, vector<32x8xf32>,
    return
  }
  func.func @transform_0(%arg0: i32) -> (i32, i32) {
    %c0_i32 = arith.constant 0 : i32
    %c0_i32_0 = arith.constant 0 : i32
    return %arg0, %c0_i32 : i32, i32
  }
  func.func @transform_1(%arg0: i32) -> (i32, i32) {
    %c0_i32 = arith.constant 0 : i32
    %c0_i32_0 = arith.constant 0 : i32
    %c0_i32_1 = arith.constant 0 : i32
    return %c0_i32, %c0_i32_0 : i32, i32
  }
  func.func @transform_2(%arg0: i32) -> (i32, i32) {
    %c0_i32 = arith.constant 0 : i32
    %c0_i32_0 = arith.constant 0 : i32
    %c0_i32_1 = arith.constant 0 : i32
    return %c0_i32, %c0_i32_0 : i32, i32
  }
  func.func @transform_3(%arg0: i32) -> (i32, i32) {
    %c0_i32 = arith.constant 0 : i32
    %c0_i32_0 = arith.constant 0 : i32
    %c0_i32_1 = arith.constant 0 : i32
    return %c0_i32, %c0_i32_0 : i32, i32
  }
  func.func @transform_4(%arg0: i32) -> (i32, i32) {
    %c0_i32 = arith.constant 0 : i32
    %c0_i32_0 = arith.constant 0 : i32
    %c0_i32_1 = arith.constant 0 : i32
    return %c0_i32, %c0_i32_0 : i32, i32
  }
  func.func @transform_5(%arg0: i32) -> (i32, i32) {
    %c0_i32 = arith.constant 0 : i32
    %c0_i32_0 = arith.constant 0 : i32
    %c0_i32_1 = arith.constant 0 : i32
    return %c0_i32, %c0_i32_0 : i32, i32
  }
  func.func @transform_6(%arg0: i32) -> (i32, i32) {
    %c0_i32 = arith.constant 0 : i32
    %c0_i32_0 = arith.constant 0 : i32
    %c0_i32_1 = arith.constant 0 : i32
    return %c0_i32, %c0_i32_0 : i32, i32
  }
  func.func @transform_7(%arg0: i32) -> (i32, i32) {
    %c0_i32 = arith.constant 0 : i32
    %c0_i32_0 = arith.constant 0 : i32
    %c0_i32_1 = arith.constant 0 : i32
    return %c0_i32, %c0_i32_0 : i32, i32
  }
  func.func @transform_8(%arg0: i32) -> (i32, i32) {
    %c0_i32 = arith.constant 0 : i32
    %c0_i32_0 = arith.constant 0 : i32
    %c0_i32_1 = arith.constant 0 : i32
    return %c0_i32, %c0_i32_0 : i32, i32
  }
  func.func @transform_9(%arg0: i32) -> (i32, i32) {
    %c0_i32 = arith.constant 0 : i32
    %c0_i32_0 = arith.constant 0 : i32
    %c0_i32_1 = arith.constant 0 : i32
    return %c0_i32, %c0_i32_0 : i32, i32
  }
  func.func @transform_10(%arg0: i32) -> (i32, i32) {
    %c0_i32 = arith.constant 0 : i32
    %c0_i32_0 = arith.constant 0 : i32
    %c0_i32_1 = arith.constant 0 : i32
    return %c0_i32, %c0_i32_0 : i32, i32
  }
  func.func @transform_11(%arg0: i32) -> (i32, i32) {
    %c0_i32 = arith.constant 0 : i32
    %c0_i32_0 = arith.constant 0 : i32
    return %arg0, %c0_i32 : i32, i32
  }
}

</mosaic_0001>

<llo_original>
// kernel: tpu_custom_call.1
$region0: #{tpu_custom_call.1}
  #allocation0 [shape = 'u32[]', space=smem, size = 0x4, offset = 0x4, fixed_abs, tag = 'smem constant byte address 0x4 - core index']
  #allocation1 [shape = 'u32[144,128]{1,0:T(1,128)}', space=vmem, size = 0x12000, scoped, tag = 'internal scratch']
  %s0 = inlined_call_operand.vmem [shape: f32[32,32], index: 0, kind: input, shape index: {}]
  %s1 = inlined_call_operand.hbm [shape: bf16[32,64], index: 1, kind: input, shape index: {}]
  %s2 = inlined_call_operand.hbm [shape: f32[1,64], index: 2, kind: input, shape index: {}]
  %s3 = inlined_call_operand.vmem [shape: bf16[64,64], index: 3, kind: input, shape index: {}]
  %s4 = inlined_call_operand.hbm [shape: f32[1,64], index: 4, kind: input, shape index: {}]
  %s5 = inlined_call_operand.vmem [shape: bf16[64,32], index: 5, kind: input, shape index: {}]
  %s6 = inlined_call_operand.hbm [shape: f32[1,32], index: 6, kind: input, shape index: {}]
  %s7 = inlined_call_operand.vmem [shape: bf16[32,32], index: 7, kind: input, shape index: {}]
  %s8 = inlined_call_operand.hbm [shape: f32[1,32], index: 8, kind: input, shape index: {}]
  %s9 = inlined_call_operand.vmem [shape: bf16[32,8], index: 9, kind: input, shape index: {}]
  %s10 = inlined_call_operand.vmem [shape: f32[1,8], index: 10, kind: input, shape index: {}]
  %s11 = inlined_call_operand.vmem [shape: f32[32,8], index: 11, kind: output, shape index: {}]
  %s12 = sld [smem:[#allocation0]]
  $region74: #{tpu_custom_call.1} parent=0
    _
  %s14 = ssub.s32 1, %s12
  %s15 = scalar_select 0, %s14, %s12
  $region1: #{tpu_custom_call.1} parent=0
    #allocation2 [shape = 'u8[8192]{0}', space=vmem, size = 0x2000, scoped, tag = 'input window, operand 1, single buffered']
    #allocation3 [shape = 's32[1]{0}', space=sflag, size = 0x4, scoped, tag = 'scoped memory for tpu_custom_call.1']
    #allocation4 [shape = 'u8[512]{0}', space=vmem, size = 0x400, scoped, tag = 'input window, operand 2, single buffered']
    #allocation5 [shape = 's32[1]{0}', space=sflag, size = 0x4, scoped, tag = 'scoped memory for tpu_custom_call.1']
    #allocation6 [shape = 'u8[512]{0}', space=vmem, size = 0x400, scoped, tag = 'input window, operand 4, single buffered']
    #allocation7 [shape = 'u8[512]{0}', space=vmem, size = 0x400, scoped, tag = 'input window, operand 6, single buffered']
    #allocation8 [shape = 's32[1]{0}', space=sflag, size = 0x4, scoped, tag = 'scoped memory for tpu_custom_call.1']
    #allocation9 [shape = 'u8[512]{0}', space=vmem, size = 0x400, scoped, tag = 'input window, operand 8, single buffered']
    %16 = vsyncpa [#allocation3], 0
    %17 = vsyncpa [#allocation5], 0
    %18 = vsyncpa [#allocation8], 0
    // Predicated region
    $region2: #{tpu_custom_call.1} parent=1 // pred_check
      _
    $region3: #{tpu_custom_call.1} parent=1 // pred_check_branch
      %20 = sbr.rel (0) target = $region5
    $region4: #{tpu_custom_call.1} parent=1 // pred_region
      _
    $region5: #{tpu_custom_call.1} parent=1 // pred_fallthru
      _
    // Predicated region
    $region6: #{tpu_custom_call.1} parent=1 // pred_check
      _
    $region7: #{tpu_custom_call.1} parent=1 // pred_check_branch
      %22 = sbr.rel (0) target = $region9
    $region8: #{tpu_custom_call.1} parent=1 // pred_region
      %s24 = ssub.s32 256, 256
      %25 = vsyncadd [#allocation3], %s24
      %s26 = sshll.u32 [#allocation2], 4
      %s27 = int_to_ptr.vmem [resolvable:$true] %s26
      %32 = dma.hbm_to_vmem [thread:$0]  %s1, 256, %s27, [#allocation3], 64, 64, 4
    $region9: #{tpu_custom_call.1} parent=1 // pred_fallthru
      _
    // Predicated region
    $region10: #{tpu_custom_call.1} parent=1 // pred_check
      _
    $region11: #{tpu_custom_call.1} parent=1 // pred_check_branch
      %34 = sbr.rel (0) target = $region13
    $region12: #{tpu_custom_call.1} parent=1 // pred_region
      %s36 = ssub.s32 16, 16
      %37 = vsyncadd [#allocation5], %s36
      %s39 = sshll.u32 [#allocation4], 4
      %s40 = int_to_ptr.vmem [resolvable:$true] %s39
      %42 = dma.hbm_to_vmem [thread:$0]  %s2, 16, %s40, [#allocation5]
    $region13: #{tpu_custom_call.1} parent=1 // pred_fallthru
      _
    // Predicated region
    $region14: #{tpu_custom_call.1} parent=1 // pred_check
      _
    $region15: #{tpu_custom_call.1} parent=1 // pred_check_branch
      %44 = sbr.rel (0) target = $region17
    $region16: #{tpu_custom_call.1} parent=1 // pred_region
      _
    $region17: #{tpu_custom_call.1} parent=1 // pred_fallthru
      _
    // Predicated region
    $region18: #{tpu_custom_call.1} parent=1 // pred_check
      _
    $region19: #{tpu_custom_call.1} parent=1 // pred_check_branch
      %46 = sbr.rel (0) target = $region21
    $region20: #{tpu_custom_call.1} parent=1 // pred_region
      %s48 = ssub.s32 16, 16
      %49 = vsyncadd [#allocation5], %s48
      %s51 = sshll.u32 [#allocation6], 4
      %s52 = int_to_ptr.vmem [resolvable:$true] %s51
      %54 = dma.hbm_to_vmem [thread:$0]  %s4, 16, %s52, [#allocation5]
    $region21: #{tpu_custom_call.1} parent=1 // pred_fallthru
      _
    // Predicated region
    $region22: #{tpu_custom_call.1} parent=1 // pred_check
      _
    $region23: #{tpu_custom_call.1} parent=1 // pred_check_branch
      %56 = sbr.rel (0) target = $region25
    $region24: #{tpu_custom_call.1} parent=1 // pred_region
      _
    $region25: #{tpu_custom_call.1} parent=1 // pred_fallthru
      _
    // Predicated region
    $region26: #{tpu_custom_call.1} parent=1 // pred_check
      _
    $region27: #{tpu_custom_call.1} parent=1 // pred_check_branch
      %58 = sbr.rel (0) target = $region29
    $region28: #{tpu_custom_call.1} parent=1 // pred_region
      %s60 = ssub.s32 16, 16
      %61 = vsyncadd [#allocation8], %s60
      %s63 = sshll.u32 [#allocation7], 4
      %s64 = int_to_ptr.vmem [resolvable:$true] %s63
      %66 = dma.hbm_to_vmem [thread:$0]  %s6, 16, %s64, [#allocation8]
    $region29: #{tpu_custom_call.1} parent=1 // pred_fallthru
      _
    // Predicated region
    $region30: #{tpu_custom_call.1} parent=1 // pred_check
      _
    $region31: #{tpu_custom_call.1} parent=1 // pred_check_branch
      %68 = sbr.rel (0) target = $region33
    $region32: #{tpu_custom_call.1} parent=1 // pred_region
      _
    $region33: #{tpu_custom_call.1} parent=1 // pred_fallthru
      _
    // Predicated region
    $region34: #{tpu_custom_call.1} parent=1 // pred_check
      _
    $region35: #{tpu_custom_call.1} parent=1 // pred_check_branch
      %70 = sbr.rel (0) target = $region37
    $region36: #{tpu_custom_call.1} parent=1 // pred_region
      %s72 = ssub.s32 16, 16
      %73 = vsyncadd [#allocation8], %s72
      %s75 = sshll.u32 [#allocation9], 4
      %s76 = int_to_ptr.vmem [resolvable:$true] %s75
      %78 = dma.hbm_to_vmem [thread:$0]  %s8, 16, %s76, [#allocation8]
    $region37: #{tpu_custom_call.1} parent=1 // pred_fallthru
      _
    // Predicated region
    $region38: #{tpu_custom_call.1} parent=1 // pred_check
      _
    $region39: #{tpu_custom_call.1} parent=1 // pred_check_branch
      %80 = sbr.rel (0) target = $region41
    $region40: #{tpu_custom_call.1} parent=1 // pred_region
      _
    $region41: #{tpu_custom_call.1} parent=1 // pred_fallthru
      _
    // Predicated region
    $region42: #{tpu_custom_call.1} parent=1 // pred_check
      _
    $region43: #{tpu_custom_call.1} parent=1 // pred_check_branch
      %82 = sbr.rel (0) target = $region45
    $region44: #{tpu_custom_call.1} parent=1 // pred_region
      _
    $region45: #{tpu_custom_call.1} parent=1 // pred_fallthru
      _
    // Predicated region
    $region46: #{tpu_custom_call.1} parent=1 // pred_check
      _
    $region47: #{tpu_custom_call.1} parent=1 // pred_check_branch
      %84 = sbr.rel (0) target = $region49
    $region48: #{tpu_custom_call.1} parent=1 // pred_region
      %85 = dma.done [#allocation3], 256
    $region49: #{tpu_custom_call.1} parent=1 // pred_fallthru
      _
    // Predicated region
    $region50: #{tpu_custom_call.1} parent=1 // pred_check
      _
    $region51: #{tpu_custom_call.1} parent=1 // pred_check_branch
      %87 = sbr.rel (0) target = $region53
    $region52: #{tpu_custom_call.1} parent=1 // pred_region
      %88 = dma.done [#allocation5], 16
    $region53: #{tpu_custom_call.1} parent=1 // pred_fallthru
      _
    // Predicated region
    $region54: #{tpu_custom_call.1} parent=1 // pred_check
      _
    $region55: #{tpu_custom_call.1} parent=1 // pred_check_branch
      %90 = sbr.rel (0) target = $region57
    $region56: #{tpu_custom_call.1} parent=1 // pred_region
      %91 = dma.done [#allocation5], 16
    $region57: #{tpu_custom_call.1} parent=1 // pred_fallthru
      _
    // Predicated region
    $region58: #{tpu_custom_call.1} parent=1 // pred_check
      _
    $region59: #{tpu_custom_call.1} parent=1 // pred_check_branch
      %93 = sbr.rel (0) target = $region61
    $region60: #{tpu_custom_call.1} parent=1 // pred_region
      %94 = dma.done [#allocation8], 16
    $region61: #{tpu_custom_call.1} parent=1 // pred_fallthru
      _
    // Predicated region
    $region62: #{tpu_custom_call.1} parent=1 // pred_check
      _
    $region63: #{tpu_custom_call.1} parent=1 // pred_check_branch
      %96 = sbr.rel (0) target = $region65
    $region64: #{tpu_custom_call.1} parent=1 // pred_region
      %97 = dma.done [#allocation8], 16
    $region65: #{tpu_custom_call.1} parent=1 // pred_fallthru
      _
    %v99 = vld [vmem:[%s0] sm:$0xff]
    %v100 = vld [vmem:[%s0 + $0x8] sm:$0xff]
    %v101 = vld [vmem:[%s0 + $0x10] sm:$0xff]
    %v102 = vld [vmem:[%s0 + $0x18] sm:$0xff]
    %v103 = vpack.c.bf16 %v100, %v99
    %v104 = vpack.c.bf16 %v102, %v101
    %v105 = vld [vmem:[#allocation2] sm:$0xf]
    %v106 = vld [vmem:[#allocation2 + $0x4] sm:$0xf]
    %v107 = vld [vmem:[#allocation2 + $0x8] sm:$0xf]
    %v108 = vld [vmem:[#allocation2 + $0xc] sm:$0xf]
    %v109 = vld [vmem:[#allocation4] sm:$0x1]
    %v111 = vlaneseq
    %v112 = vshrl.u32 %v111, 7
    %v113 = vsub.s32 0, %v112
    %v114 = vrot.slane %v109, %v113
    %v120 = vunpack.c.l.b16 %v105
    %v121 = vunpack.c.l.b16 %v106
    %v122 = vunpack.c.l.b16 %v107
    %v123 = vunpack.c.l.b16 %v108
    %v124 = vpack.c.b16 %v121, %v120
    %v125 = vpack.c.b16 %v123, %v122
    %vm128 = vcmask 261120
    %v130 = vsel %vm128, %v103, 0
    %v133 = vsel %vm128, %v104, 0
    %135 = vmatprep.subr.bf16.mxu0 0
    %136 = vmatpush1.bf16.msra.mxu0 0
    %137 = vmatprep.subr.bf16.mxu0 0
    %138 = vmatpush1.bf16.msra.mxu0 0
    %139 = vmatprep.subr.bf16.mxu0 0
    %140 = vmatpush1.bf16.msra.mxu0 0
    %141 = vmatprep.subr.bf16.mxu0 0
    %142 = vmatpush1.bf16.msra.mxu0 0
    %143 = vmatprep.subr.bf16.mxu0 0
    %144 = vmatpush1.bf16.msra.mxu0 0
    %145 = vmatprep.subr.bf16.mxu0 0
    %146 = vmatpush1.bf16.msra.mxu0 0
    %147 = vmatprep.subr.bf16.mxu0 0
    %148 = vmatpush1.bf16.msra.mxu0 %v125
    %149 = vmatprep.subr.bf16.mxu0 0
    %150 = vmatpush1.bf16.msra.mxu0 %v124
    %151 = vmatprep.subr.bf16.mxu0 0
    %152 = vmatpush2.bf16.msra.mxu0 0
    %153 = vmatprep.subr.bf16.mxu0 0
    %154 = vmatpush2.bf16.msra.mxu0 0
    %155 = vmatprep.subr.bf16.mxu0 0
    %156 = vmatpush2.bf16.msra.mxu0 0
    %157 = vmatprep.subr.bf16.mxu0 0
    %158 = vmatpush2.bf16.msra.mxu0 0
    %159 = vmatprep.subr.bf16.mxu0 0
    %160 = vmatpush2.bf16.msra.mxu0 0
    %161 = vmatprep.subr.bf16.mxu0 0
    %162 = vmatpush2.bf16.msra.mxu0 0
    %163 = vmatprep.subr.bf16.mxu0 0
    %164 = vmatpush2.bf16.msra.mxu0 0
    %165 = vmatprep.subr.bf16.mxu0 0
    %166 = vmatpush2.bf16.msra.mxu0 0
    %167 = vmatprep.mubr.bf16.mxu0 0
    %168 = vmatmul.mubr.bf16.gmra.mxu0 %v130
    %v169 = vpop.f32.mrf.mxu0
    %v170 = vadd.f32 %v114, %v169
    %v171 = vpop.f32.mrf.mxu0
    %v172 = vpop.f32.mrf.mxu0
    %v173 = vadd.f32 %v114, %v172
    %v174 = vpop.f32.mrf.mxu0
    %175 = vmatprep.mubr.bf16.mxu0 0
    %176 = vmatmul.mubr.bf16.gmra.mxu0 %v133
    %v177 = vpop.f32.mrf.mxu0
    %v178 = vadd.f32 %v114, %v177
    %v179 = vpop.f32.mrf.mxu0
    %v180 = vpop.f32.mrf.mxu0
    %v181 = vadd.f32 %v114, %v180
    %v182 = vpop.f32.mrf.mxu0
    %183 = vdwg.mxu0
    %v184 = vmax.f32 %v170, 0.0
    %v185 = vmax.f32 %v173, 0.0
    %v186 = vmax.f32 %v178, 0.0
    %v187 = vmax.f32 %v181, 0.0
    %v188 = vpack.c.bf16 %v185, %v184
    %v189 = vpack.c.bf16 %v187, %v186
    %v190 = vld [vmem:[%s3] sm:$0xf]
    %v191 = vld [vmem:[%s3 + $0x4] sm:$0xf]
    %v192 = vld [vmem:[%s3 + $0x8] sm:$0xf]
    %v193 = vld [vmem:[%s3 + $0xc] sm:$0xf]
    %v194 = vld [vmem:[%s3 + $0x10] sm:$0xf]
    %v195 = vld [vmem:[%s3 + $0x14] sm:$0xf]
    %v196 = vld [vmem:[%s3 + $0x18] sm:$0xf]
    %v197 = vld [vmem:[%s3 + $0x1c] sm:$0xf]
    %v198 = vld [vmem:[#allocation6] sm:$0x1]
    %v200 = vlaneseq
    %v201 = vshrl.u32 %v200, 7
    %v202 = vsub.s32 0, %v201
    %v203 = vrot.slane %v198, %v202
    %v213 = vunpack.c.l.b16 %v190
    %v214 = vunpack.c.l.b16 %v191
    %v215 = vunpack.c.l.b16 %v192
    %v216 = vunpack.c.l.b16 %v193
    %v217 = vunpack.c.l.b16 %v194
    %v218 = vunpack.c.l.b16 %v195
    %v219 = vunpack.c.l.b16 %v196
    %v220 = vunpack.c.l.b16 %v197
    %v221 = vpack.c.b16 %v214, %v213
    %v222 = vpack.c.b16 %v216, %v215
    %v223 = vpack.c.b16 %v218, %v217
    %v224 = vpack.c.b16 %v220, %v219
    %vm229 = vcmask 523264
    %v231 = vsel %vm229, %v188, 0
    %v234 = vsel %vm229, %v189, 0
    %236 = vmatprep.subr.bf16.mxu0 0
    %237 = vmatpush1.bf16.msra.mxu0 0
    %238 = vmatprep.subr.bf16.mxu0 0
    %239 = vmatpush1.bf16.msra.mxu0 0
    %240 = vmatprep.subr.bf16.mxu0 0
    %241 = vmatpush1.bf16.msra.mxu0 0
    %242 = vmatprep.subr.bf16.mxu0 0
    %243 = vmatpush1.bf16.msra.mxu0 0
    %244 = vmatprep.subr.bf16.mxu0 0
    %245 = vmatpush1.bf16.msra.mxu0 %v224
    %246 = vmatprep.subr.bf16.mxu0 0
    %247 = vmatpush1.bf16.msra.mxu0 %v223
    %248 = vmatprep.subr.bf16.mxu0 0
    %249 = vmatpush1.bf16.msra.mxu0 %v222
    %250 = vmatprep.subr.bf16.mxu0 0
    %251 = vmatpush1.bf16.msra.mxu0 %v221
    %252 = vmatprep.subr.bf16.mxu0 0
    %253 = vmatpush2.bf16.msra.mxu0 0
    %254 = vmatprep.subr.bf16.mxu0 0
    %255 = vmatpush2.bf16.msra.mxu0 0
    %256 = vmatprep.subr.bf16.mxu0 0
    %257 = vmatpush2.bf16.msra.mxu0 0
    %258 = vmatprep.subr.bf16.mxu0 0
    %259 = vmatpush2.bf16.msra.mxu0 0
    %260 = vmatprep.subr.bf16.mxu0 0
    %261 = vmatpush2.bf16.msra.mxu0 0
    %262 = vmatprep.subr.bf16.mxu0 0
    %263 = vmatpush2.bf16.msra.mxu0 0
    %264 = vmatprep.subr.bf16.mxu0 0
    %265 = vmatpush2.bf16.msra.mxu0 0
    %266 = vmatprep.subr.bf16.mxu0 0
    %267 = vmatpush2.bf16.msra.mxu0 0
    %268 = vmatprep.mubr.bf16.mxu0 0
    %269 = vmatmul.mubr.bf16.gmra.mxu0 %v231
    %v270 = vpop.f32.mrf.mxu0
    %v271 = vadd.f32 %v203, %v270
    %v272 = vpop.f32.mrf.mxu0
    %v273 = vpop.f32.mrf.mxu0
    %v274 = vadd.f32 %v203, %v273
    %v275 = vpop.f32.mrf.mxu0
    %276 = vmatprep.mubr.bf16.mxu0 0
    %277 = vmatmul.mubr.bf16.gmra.mxu0 %v234
    %v278 = vpop.f32.mrf.mxu0
    %v279 = vadd.f32 %v203, %v278
    %v280 = vpop.f32.mrf.mxu0
    %v281 = vpop.f32.mrf.mxu0
    %v282 = vadd.f32 %v203, %v281
    %v283 = vpop.f32.mrf.mxu0
    %284 = vdwg.mxu0
    %v285 = vmax.f32 %v271, 0.0
    %v286 = vmax.f32 %v274, 0.0
    %v287 = vmax.f32 %v279, 0.0
    %v288 = vmax.f32 %v282, 0.0
    %v289 = vpack.c.bf16 %v286, %v285
    %v290 = vpack.c.bf16 %v288, %v287
    %v291 = vld [vmem:[%s5] sm:$0xf]
    %v292 = vld [vmem:[%s5 + $0x4] sm:$0xf]
    %v293 = vld [vmem:[%s5 + $0x8] sm:$0xf]
    %v294 = vld [vmem:[%s5 + $0xc] sm:$0xf]
    %v295 = vld [vmem:[%s5 + $0x10] sm:$0xf]
    %v296 = vld [vmem:[%s5 + $0x14] sm:$0xf]
    %v297 = vld [vmem:[%s5 + $0x18] sm:$0xf]
    %v298 = vld [vmem:[%s5 + $0x1c] sm:$0xf]
    %v299 = vld [vmem:[#allocation7] sm:$0x1]
    %v301 = vlaneseq
    %v302 = vshrl.u32 %v301, 7
    %v303 = vsub.s32 0, %v302
    %v304 = vrot.slane %v299, %v303
    %v314 = vunpack.c.l.b16 %v291
    %v315 = vunpack.c.l.b16 %v292
    %v316 = vunpack.c.l.b16 %v293
    %v317 = vunpack.c.l.b16 %v294
    %v318 = vunpack.c.l.b16 %v295
    %v319 = vunpack.c.l.b16 %v296
    %v320 = vunpack.c.l.b16 %v297
    %v321 = vunpack.c.l.b16 %v298
    %v322 = vpack.c.b16 %v315, %v314
    %v323 = vpack.c.b16 %v317, %v316
    %v324 = vpack.c.b16 %v319, %v318
    %v325 = vpack.c.b16 %v321, %v320
    %v331 = vsel %vm229, %v289, 0
    %v334 = vsel %vm229, %v290, 0
    %336 = vmatprep.subr.bf16.mxu0 0
    %337 = vmatpush1.bf16.msra.mxu0 0
    %338 = vmatprep.subr.bf16.mxu0 0
    %339 = vmatpush1.bf16.msra.mxu0 0
    %340 = vmatprep.subr.bf16.mxu0 0
    %341 = vmatpush1.bf16.msra.mxu0 0
    %342 = vmatprep.subr.bf16.mxu0 0
    %343 = vmatpush1.bf16.msra.mxu0 0
    %344 = vmatprep.subr.bf16.mxu0 0
    %345 = vmatpush1.bf16.msra.mxu0 %v325
    %346 = vmatprep.subr.bf16.mxu0 0
    %347 = vmatpush1.bf16.msra.mxu0 %v324
    %348 = vmatprep.subr.bf16.mxu0 0
    %349 = vmatpush1.bf16.msra.mxu0 %v323
    %350 = vmatprep.subr.bf16.mxu0 0
    %351 = vmatpush1.bf16.msra.mxu0 %v322
    %352 = vmatprep.subr.bf16.mxu0 0
    %353 = vmatpush2.bf16.msra.mxu0 0
    %354 = vmatprep.subr.bf16.mxu0 0
    %355 = vmatpush2.bf16.msra.mxu0 0
    %356 = vmatprep.subr.bf16.mxu0 0
    %357 = vmatpush2.bf16.msra.mxu0 0
    %358 = vmatprep.subr.bf16.mxu0 0
    %359 = vmatpush2.bf16.msra.mxu0 0
    %360 = vmatprep.subr.bf16.mxu0 0
    %361 = vmatpush2.bf16.msra.mxu0 0
    %362 = vmatprep.subr.bf16.mxu0 0
    %363 = vmatpush2.bf16.msra.mxu0 0
    %364 = vmatprep.subr.bf16.mxu0 0
    %365 = vmatpush2.bf16.msra.mxu0 0
    %366 = vmatprep.subr.bf16.mxu0 0
    %367 = vmatpush2.bf16.msra.mxu0 0
    %368 = vmatprep.mubr.bf16.mxu0 0
    %369 = vmatmul.mubr.bf16.gmra.mxu0 %v331
    %v370 = vpop.f32.mrf.mxu0
    %v371 = vadd.f32 %v304, %v370
    %v372 = vpop.f32.mrf.mxu0
    %v373 = vpop.f32.mrf.mxu0
    %v374 = vadd.f32 %v304, %v373
    %v375 = vpop.f32.mrf.mxu0
    %376 = vmatprep.mubr.bf16.mxu0 0
    %377 = vmatmul.mubr.bf16.gmra.mxu0 %v334
    %v378 = vpop.f32.mrf.mxu0
    %v379 = vadd.f32 %v304, %v378
    %v380 = vpop.f32.mrf.mxu0
    %v381 = vpop.f32.mrf.mxu0
    %v382 = vadd.f32 %v304, %v381
    %v383 = vpop.f32.mrf.mxu0
    %384 = vdwg.mxu0
    %v385 = vmax.f32 %v371, 0.0
    %v386 = vmax.f32 %v374, 0.0
    %v387 = vmax.f32 %v379, 0.0
    %v388 = vmax.f32 %v382, 0.0
    %v389 = vpack.c.bf16 %v386, %v385
    %v390 = vpack.c.bf16 %v388, %v387
    %v391 = vld [vmem:[%s7] sm:$0xf]
    %v392 = vld [vmem:[%s7 + $0x4] sm:$0xf]
    %v393 = vld [vmem:[%s7 + $0x8] sm:$0xf]
    %v394 = vld [vmem:[%s7 + $0xc] sm:$0xf]
    %v395 = vld [vmem:[#allocation9] sm:$0x1]
    %v397 = vlaneseq
    %v398 = vshrl.u32 %v397, 7
    %v399 = vsub.s32 0, %v398
    %v400 = vrot.slane %v395, %v399
    %v406 = vunpack.c.l.b16 %v391
    %v407 = vunpack.c.l.b16 %v392
    %v408 = vunpack.c.l.b16 %v393
    %v409 = vunpack.c.l.b16 %v394
    %v410 = vpack.c.b16 %v407, %v406
    %v411 = vpack.c.b16 %v409, %v408
    %v415 = vsel %vm128, %v389, 0
    %v418 = vsel %vm128, %v390, 0
    %420 = vmatprep.subr.bf16.mxu0 0
    %421 = vmatpush1.bf16.msra.mxu0 0
    %422 = vmatprep.subr.bf16.mxu0 0
    %423 = vmatpush1.bf16.msra.mxu0 0
    %424 = vmatprep.subr.bf16.mxu0 0
    %425 = vmatpush1.bf16.msra.mxu0 0
    %426 = vmatprep.subr.bf16.mxu0 0
    %427 = vmatpush1.bf16.msra.mxu0 0
    %428 = vmatprep.subr.bf16.mxu0 0
    %429 = vmatpush1.bf16.msra.mxu0 0
    %430 = vmatprep.subr.bf16.mxu0 0
    %431 = vmatpush1.bf16.msra.mxu0 0
    %432 = vmatprep.subr.bf16.mxu0 0
    %433 = vmatpush1.bf16.msra.mxu0 %v411
    %434 = vmatprep.subr.bf16.mxu0 0
    %435 = vmatpush1.bf16.msra.mxu0 %v410
    %436 = vmatprep.subr.bf16.mxu0 0
    %437 = vmatpush2.bf16.msra.mxu0 0
    %438 = vmatprep.subr.bf16.mxu0 0
    %439 = vmatpush2.bf16.msra.mxu0 0
    %440 = vmatprep.subr.bf16.mxu0 0
    %441 = vmatpush2.bf16.msra.mxu0 0
    %442 = vmatprep.subr.bf16.mxu0 0
    %443 = vmatpush2.bf16.msra.mxu0 0
    %444 = vmatprep.subr.bf16.mxu0 0
    %445 = vmatpush2.bf16.msra.mxu0 0
    %446 = vmatprep.subr.bf16.mxu0 0
    %447 = vmatpush2.bf16.msra.mxu0 0
    %448 = vmatprep.subr.bf16.mxu0 0
    %449 = vmatpush2.bf16.msra.mxu0 0
    %450 = vmatprep.subr.bf16.mxu0 0
    %451 = vmatpush2.bf16.msra.mxu0 0
    %452 = vmatprep.mubr.bf16.mxu0 0
    %453 = vmatmul.mubr.bf16.gmra.mxu0 %v415
    %v454 = vpop.f32.mrf.mxu0
    %v455 = vadd.f32 %v400, %v454
    %v456 = vpop.f32.mrf.mxu0
    %v457 = vpop.f32.mrf.mxu0
    %v458 = vadd.f32 %v400, %v457
    %v459 = vpop.f32.mrf.mxu0
    %460 = vmatprep.mubr.bf16.mxu0 0
    %461 = vmatmul.mubr.bf16.gmra.mxu0 %v418
    %v462 = vpop.f32.mrf.mxu0
    %v463 = vadd.f32 %v400, %v462
    %v464 = vpop.f32.mrf.mxu0
    %v465 = vpop.f32.mrf.mxu0
    %v466 = vadd.f32 %v400, %v465
    %v467 = vpop.f32.mrf.mxu0
    %468 = vdwg.mxu0
    %v469 = vmax.f32 %v455, 0.0
    %v470 = vmax.f32 %v458, 0.0
    %v471 = vmax.f32 %v463, 0.0
    %v472 = vmax.f32 %v466, 0.0
    %v473 = vpack.c.bf16 %v470, %v469
    %v474 = vpack.c.bf16 %v472, %v471
    %v475 = vld [vmem:[%s9] sm:$0xf]
    %v476 = vld [vmem:[%s9 + $0x4] sm:$0xf]
    %v477 = vld [vmem:[%s9 + $0x8] sm:$0xf]
    %v478 = vld [vmem:[%s9 + $0xc] sm:$0xf]
    %v479 = vld [vmem:[%s10] sm:$0x1]
    %v481 = vlaneseq
    %v482 = vshrl.u32 %v481, 7
    %v483 = vsub.s32 0, %v482
    %v484 = vrot.slane %v479, %v483
    %v490 = vunpack.c.l.b16 %v475
    %v491 = vunpack.c.l.b16 %v476
    %v492 = vunpack.c.l.b16 %v477
    %v493 = vunpack.c.l.b16 %v478
    %v494 = vpack.c.b16 %v491, %v490
    %v495 = vpack.c.b16 %v493, %v492
    %v499 = vsel %vm128, %v473, 0
    %v502 = vsel %vm128, %v474, 0
    %504 = vmatprep.subr.bf16.mxu0 0
    %505 = vmatpush1.bf16.msra.mxu0 0
    %506 = vmatprep.subr.bf16.mxu0 0
    %507 = vmatpush1.bf16.msra.mxu0 0
    %508 = vmatprep.subr.bf16.mxu0 0
    %509 = vmatpush1.bf16.msra.mxu0 0
    %510 = vmatprep.subr.bf16.mxu0 0
    %511 = vmatpush1.bf16.msra.mxu0 0
    %512 = vmatprep.subr.bf16.mxu0 0
    %513 = vmatpush1.bf16.msra.mxu0 0
    %514 = vmatprep.subr.bf16.mxu0 0
    %515 = vmatpush1.bf16.msra.mxu0 0
    %516 = vmatprep.subr.bf16.mxu0 0
    %517 = vmatpush1.bf16.msra.mxu0 %v495
    %518 = vmatprep.subr.bf16.mxu0 0
    %519 = vmatpush1.bf16.msra.mxu0 %v494
    %520 = vmatprep.subr.bf16.mxu0 0
    %521 = vmatpush2.bf16.msra.mxu0 0
    %522 = vmatprep.subr.bf16.mxu0 0
    %523 = vmatpush2.bf16.msra.mxu0 0
    %524 = vmatprep.subr.bf16.mxu0 0
    %525 = vmatpush2.bf16.msra.mxu0 0
    %526 = vmatprep.subr.bf16.mxu0 0
    %527 = vmatpush2.bf16.msra.mxu0 0
    %528 = vmatprep.subr.bf16.mxu0 0
    %529 = vmatpush2.bf16.msra.mxu0 0
    %530 = vmatprep.subr.bf16.mxu0 0
    %531 = vmatpush2.bf16.msra.mxu0 0
    %532 = vmatprep.subr.bf16.mxu0 0
    %533 = vmatpush2.bf16.msra.mxu0 0
    %534 = vmatprep.subr.bf16.mxu0 0
    %535 = vmatpush2.bf16.msra.mxu0 0
    %536 = vmatprep.mubr.bf16.mxu0 0
    %537 = vmatmul.mubr.bf16.gmra.mxu0 %v499
    %v538 = vpop.f32.mrf.mxu0
    %v539 = vadd.f32 %v484, %v538
    %v540 = vpop.f32.mrf.mxu0
    %v541 = vpop.f32.mrf.mxu0
    %v542 = vadd.f32 %v484, %v541
    %v543 = vpop.f32.mrf.mxu0
    %544 = vmatprep.mubr.bf16.mxu0 0
    %545 = vmatmul.mubr.bf16.gmra.mxu0 %v502
    %v546 = vpop.f32.mrf.mxu0
    %v547 = vadd.f32 %v484, %v546
    %v548 = vpop.f32.mrf.mxu0
    %v549 = vpop.f32.mrf.mxu0
    %v550 = vadd.f32 %v484, %v549
    %v551 = vpop.f32.mrf.mxu0
    %552 = vdwg.mxu0
    %vm553 = vcmask 64512
    %v554 = vsel %vm553, %v539, -inf
    %555 = vmax.xlane.f32.xlu0 %v554
    %v556 = vpop.xlane.xlu0 %555
    %v557 = vsel %vm553, %v542, -inf
    %558 = vmax.xlane.f32.xlu0 %v557
    %v559 = vpop.xlane.xlu0 %558
    %v560 = vsel %vm553, %v547, -inf
    %561 = vmax.xlane.f32.xlu0 %v560
    %v562 = vpop.xlane.xlu0 %561
    %v563 = vsel %vm553, %v550, -inf
    %564 = vmax.xlane.f32.xlu0 %v563
    %v565 = vpop.xlane.xlu0 %564
    %v566 = vsub.f32 %v539, %v556
    %v567 = vsub.f32 %v542, %v559
    %v568 = vsub.f32 %v547, %v562
    %v569 = vsub.f32 %v550, %v565
    %v570 = vmul.f32 %v566, 1.442695
    %v571 = vpow.pop %v570
    %v572 = vmul.f32 %v567, 1.442695
    %v573 = vpow.pop %v572
    %v574 = vmul.f32 %v568, 1.442695
    %v575 = vpow.pop %v574
    %v576 = vmul.f32 %v569, 1.442695
    %v577 = vpow.pop %v576
    %v578 = vsel %vm553, %v571, 0.0
    %579 = vadd.xlane.f32.xlu0 %v578
    %v580 = vpop.xlane.xlu0 %579
    %v581 = vsel %vm553, %v573, 0.0
    %582 = vadd.xlane.f32.xlu0 %v581
    %v583 = vpop.xlane.xlu0 %582
    %v584 = vsel %vm553, %v575, 0.0
    %585 = vadd.xlane.f32.xlu0 %v584
    %v586 = vpop.xlane.xlu0 %585
    %v587 = vsel %vm553, %v577, 0.0
    %588 = vadd.xlane.f32.xlu0 %v587
    %v589 = vpop.xlane.xlu0 %588
    %v590 = vrcp.pop %v580
    %v591 = vrcp.pop %v583
    %v592 = vrcp.pop %v586
    %v593 = vrcp.pop %v589
    %v594 = vmul.f32 %v580, %v590
    %v595 = vmul.f32 %v583, %v591
    %v596 = vmul.f32 %v586, %v592
    %v597 = vmul.f32 %v589, %v593
    %v598 = vsub.f32 2.0, %v594
    %v599 = vsub.f32 2.0, %v595
    %v600 = vsub.f32 2.0, %v596
    %v601 = vsub.f32 2.0, %v597
    %v602 = vmul.f32 %v590, %v598
    %v603 = vmul.f32 %v591, %v599
    %v604 = vmul.f32 %v592, %v600
    %v605 = vmul.f32 %v593, %v601
    %v606 = vmul.f32 %v571, %v602
    %v607 = vmul.f32 %v573, %v603
    %v608 = vmul.f32 %v575, %v604
    %v609 = vmul.f32 %v577, %v605
    %610 = vst.msk [vmem:[%s11] sm:$0xff] %vm553, %v606
    %611 = vst.msk [vmem:[%s11 + $0x8] sm:$0xff] %vm553, %v607
    %612 = vst.msk [vmem:[%s11 + $0x10] sm:$0xff] %vm553, %v608
    %613 = vst.msk [vmem:[%s11 + $0x18] sm:$0xff] %vm553, %v609
    // Predicated region
    $region66: #{tpu_custom_call.1} parent=1 // pred_check
      _
    $region67: #{tpu_custom_call.1} parent=1 // pred_check_branch
      %615 = sbr.rel (0) target = $region69
    $region68: #{tpu_custom_call.1} parent=1 // pred_region
      _
    $region69: #{tpu_custom_call.1} parent=1 // pred_fallthru
      _
    // Predicated region
    $region70: #{tpu_custom_call.1} parent=1 // pred_check
      _
    $region71: #{tpu_custom_call.1} parent=1 // pred_check_branch
      %617 = sbr.rel (0) target = $region73
    $region72: #{tpu_custom_call.1} parent=1 // pred_region
      _
    $region73: #{tpu_custom_call.1} parent=1 // pred_fallthru
      _
    %618 = vsyncpa [#allocation3], 1
    %619 = vsyncpa [#allocation5], 1
    %620 = vsyncpa [#allocation8], 1

</llo_original>
